<compile_context>
chip_gen: v7x
topology: tpu7x:2x2x1
jax: 0.10.0
libtpu: 0.0.40
codegen_flags: <defaults>
</compile_context>

<pallas_src>
import functools

import jax
import jax.numpy as jnp
from jax.experimental import pallas as pl
from jax.experimental.pallas import tpu as pltpu


def _round_up(v: int, m: int) -> int:
    return -(-v // m) * m


def _vmem_capacity_bytes() -> int:
    try:
        return int(pltpu.get_tpu_info().vmem_capacity_bytes)
    except Exception:
        return 64 << 20  # conservative (v7x per-TensorCore VMEM)


def _sublane(dtype) -> int:
    itemsize = jnp.dtype(dtype).itemsize
    if itemsize >= 4:
        return 8
    if itemsize == 2:
        return 16
    return 32


# --------------------- fused fast path (x resident in VMEM) -------------------
def _fused_kernel(x_ref, o_ref):
    x = x_ref[...].astype(jnp.float32)
    n = x.shape[0]
    mu = jnp.mean(x, axis=0, keepdims=True)                    # (1, D)
    xc = x - mu
    sum_sq = jnp.sum(xc * xc)
    inv = jax.lax.rsqrt(sum_sq * jnp.float32(1.0 / n) + jnp.float32(1e-6))
    o_ref[...] = (xc * inv).astype(o_ref.dtype)


# ----------------------------- Pass 1: statistics -----------------------------
def _stats_kernel(x_ref, col_mean_ref, inv_ref, colsum_sc, colsq_sc, *, n_rows):
    i = pl.program_id(0)
    tile_n, d = x_ref.shape

    @pl.when(i == 0)
    def _init():
        colsum_sc[...] = jnp.zeros_like(colsum_sc)
        colsq_sc[...] = jnp.zeros_like(colsq_sc)

    x = x_ref[...].astype(jnp.float32)
    if n_rows % tile_n != 0:
        # Ragged last tile: rows past n_rows in the VMEM buffer are
        # unspecified -> mask them to zero (cheap VPU select; sweep is
        # HBM-bound so this is free).
        row = jax.lax.broadcasted_iota(jnp.int32, (tile_n, 1), 0) + i * tile_n
        x = jnp.where(row < n_rows, x, jnp.float32(0.0))

    # (8, D) vreg-aligned accumulation: pure VALU adds in the hot loop; the
    # 8->1 cross-sublane (XLU) reduce is deferred to the finalize branch.
    xg = x.reshape(tile_n // 8, 8, d)
    colsum_sc[...] += jnp.sum(xg, axis=0)
    colsq_sc[...] += jnp.sum(xg * xg, axis=0)

    @pl.when(i == pl.num_programs(0) - 1)
    def _finalize():
        inv_n = jnp.float32(1.0 / n_rows)
        col_sum = jnp.sum(colsum_sc[...], axis=0, keepdims=True)   # (1, D)
        col_sq = jnp.sum(colsq_sc[...], axis=0, keepdims=True)     # (1, D)
        mu = col_sum * inv_n
        col_mean_ref[...] = mu
        # sum over real rows of (x - mu)^2 via sum(x^2) - N*mu^2
        sum_sq = jnp.sum(col_sq) - jnp.float32(n_rows) * jnp.sum(mu * mu)
        inv = jax.lax.rsqrt(sum_sq * inv_n + jnp.float32(1e-6))
        inv_ref[...] = jnp.broadcast_to(inv, (1, 1)).astype(jnp.float32)


# ----------------------------- Pass 2: normalize ------------------------------
def _normalize_kernel(col_mean_ref, inv_ref, x_ref, o_ref):
    mu = col_mean_ref[...]                       # (1, D) f32, broadcasts
    inv = inv_ref[0, 0]                          # scalar f32 read from SMEM
    xc = x_ref[...].astype(jnp.float32) - mu
    o_ref[...] = (xc * inv).astype(o_ref.dtype)  # single store per tile


# --------------------------------- wrapper ------------------------------------
def pair_norm(x: jax.Array, *, force_streaming: bool = False,
              max_tile_rows: int | None = None) -> jax.Array:
    """PairNorm forward. x: [N, D] float array."""
    assert x.ndim == 2, "pair_norm expects a 2-D [N, D] input"
    n, d = x.shape
    itemsize = jnp.dtype(x.dtype).itemsize

    cap = _vmem_capacity_bytes()
    vmem_limit = int(min(cap * 3 // 4, 96 << 20))
    fast_budget = int(min(cap // 2, 40 << 20))

    # ---- fused fast path: whole x (+ f32 temporaries) resident in VMEM ----
    fused_bytes = n * d * (2 * itemsize + 8)     # in + out + ~2 f32 temps
    if (not force_streaming) and fused_bytes <= fast_budget:
        return pl.pallas_call(
            _fused_kernel,
            out_shape=jax.ShapeDtypeStruct((n, d), x.dtype),
            compiler_params=pltpu.CompilerParams(vmem_limit_bytes=vmem_limit),
        )(x)

    # ---- streaming two-pass path (2 reads + 1 write of x, no padding) ----
    sub = _sublane(x.dtype)
    row_bytes = max(1, d * itemsize)
    n_rounded = _round_up(n, sub)

    def _tile_rows(target_bytes: int) -> int:
        r = (target_bytes // row_bytes) // sub * sub
        r = max(sub, r)
        if max_tile_rows is not None:
            r = max(sub, min(r, _round_up(max_tile_rows, sub)))
        return min(r, n_rounded)

    tile_n1 = _tile_rows(8 << 20)   # pass 1: input stream only -> bigger tiles
    tile_n2 = _tile_rows(4 << 20)   # pass 2: input + output streams
    grid1 = pl.cdiv(n, tile_n1)
    grid2 = pl.cdiv(n, tile_n2)

    # Pass 1: column mean + rsqrt scale (sequential reduction over row tiles).
    col_mean, inv = pl.pallas_call(
        functools.partial(_stats_kernel, n_rows=n),
        out_shape=(
            jax.ShapeDtypeStruct((1, d), jnp.float32),
            jax.ShapeDtypeStruct((1, 1), jnp.float32),
        ),
        grid_spec=pltpu.PrefetchScalarGridSpec(
            num_scalar_prefetch=0,
            grid=(grid1,),
            in_specs=[pl.BlockSpec((tile_n1, d), lambda i: (i, 0))],
            out_specs=(
                pl.BlockSpec((1, d), lambda i: (0, 0)),
                pl.BlockSpec((1, 1), lambda i: (0, 0)),
            ),
            scratch_shapes=[
                pltpu.VMEM((8, d), jnp.float32),   # running col sum (8-row partials)
                pltpu.VMEM((8, d), jnp.float32),   # running col sum of squares
            ],
        ),
        compiler_params=pltpu.CompilerParams(
            dimension_semantics=("arbitrary",),
            vmem_limit_bytes=vmem_limit,
        ),
    )(x)

    # Pass 2: (x - mu) * inv over independent row tiles (megacore parallel).
    out = pl.pallas_call(
        _normalize_kernel,
        out_shape=jax.ShapeDtypeStruct((n, d), x.dtype),
        grid_spec=pltpu.PrefetchScalarGridSpec(
            num_scalar_prefetch=0,
            grid=(grid2,),
            in_specs=[
                pl.BlockSpec((1, d), lambda i: (0, 0)),
                pl.BlockSpec(memory_space=pltpu.MemorySpace.SMEM),  # scalar inv
                pl.BlockSpec((tile_n2, d), lambda i: (i, 0)),
            ],
            out_specs=pl.BlockSpec((tile_n2, d), lambda i: (i, 0)),
        ),
        compiler_params=pltpu.CompilerParams(
            dimension_semantics=("parallel",),
            vmem_limit_bytes=vmem_limit,
        ),
    )(col_mean, inv, x)
    return out


def pair_norm_ref(x: jnp.ndarray) -> jnp.ndarray:
    """Pure-JAX reference mirroring the PyTorch module exactly."""
    col_mean = x.mean(axis=0)
    xc = x - col_mean
    rownorm_mean = jnp.sqrt(1e-6 + (xc ** 2).sum(axis=1).mean())
    return xc / rownorm_mean


if __name__ == "__main__":
    key = jax.random.PRNGKey(0)
    k1, k2, k3 = jax.random.split(key, 3)

    # 1) Small lane-aligned graph: fused fast path (whole x resident in VMEM).
    x1 = jax.random.normal(k1, (16, 128), dtype=jnp.float32)
    o1 = jax.block_until_ready(pair_norm(x1))
    r1 = pair_norm_ref(x1)
    assert o1.shape == r1.shape and o1.dtype == r1.dtype
    assert jnp.allclose(o1, r1, atol=1e-4, rtol=1e-4), "mismatch (fused, aligned)"

    # 2) Unaligned rows/cols (37 x 96): no padding needed, full-dim blocks.
    x2 = jax.random.normal(k2, (37, 96), dtype=jnp.float32)
    o2 = jax.block_until_ready(pair_norm(x2))
    r2 = pair_norm_ref(x2)
    assert o2.shape == r2.shape and o2.dtype == r2.dtype
    assert jnp.allclose(o2, r2, atol=1e-4, rtol=1e-4), "mismatch (fused, unaligned)"

    # 3) Force the streaming two-pass path with small tiles so multi-tile
    #    accumulation and the ragged last-tile masking are exercised.
    x3 = jax.random.normal(k3, (300, 96), dtype=jnp.float32) + 3.0
    o3 = jax.block_until_ready(
        pair_norm(x3, force_streaming=True, max_tile_rows=64))
    r3 = pair_norm_ref(x3)
    assert o3.shape == r3.shape and o3.dtype == r3.dtype
    assert jnp.allclose(o3, r3, atol=1e-4, rtol=1e-4), "mismatch (streaming)"

    print("KERNEL_OK")
</pallas_src>

<mosaic_0001>
module attributes {stable_mosaic.version = 11 : i64} {
  func.func @_fused_kernel(%arg0: memref<16x128xf32, #tpu.memory_space<vmem>>, %arg1: memref<16x128xf32, #tpu.memory_space<vmem>>) attributes {dimension_semantics = [], scalar_prefetch = 0 : i64, scratch_operands = 0 : i64, tpu.core_type = #tpu.core_type<tc>} {
    %c0 = arith.constant 0 : index
    %c0_0 = arith.constant 0 : index
    %0 = vector.load %arg0[%c0, %c0_0] : memref<16x128xf32, #tpu.memory_space<vmem>>, vector<16x128xf32>
    %cst = arith.constant dense<0.000000e+00> : vector<128xf32>
    %1 = vector.multi_reduction <add>, %0, %cst [0] : vector<16x128xf32> to vector<128xf32>
    %2 = vector.shape_cast %1 : vector<128xf32> to vector<1x128xf32>
    %cst_1 = arith.constant 1.600000e+01 : f32
    %3 = vector.broadcast %cst_1 : f32 to vector<1x128xf32>
    %4 = arith.divf %2, %3 : vector<1x128xf32>
    %5 = vector.broadcast %4 : vector<1x128xf32> to vector<16x128xf32>
    %6 = arith.subf %0, %5 : vector<16x128xf32>
    %7 = arith.mulf %6, %6 : vector<16x128xf32>
    %8 = vector.shape_cast %7 : vector<16x128xf32> to vector<1x16x128xf32>
    %cst_2 = arith.constant dense<0.000000e+00> : vector<1xf32>
    %9 = vector.multi_reduction <add>, %8, %cst_2 [1, 2] : vector<1x16x128xf32> to vector<1xf32>
    %10 = vector.shape_cast %9 : vector<1xf32> to vector<1x1x1xf32>
    %11 = vector.extract %10[0, 0, 0] : f32 from vector<1x1x1xf32>
    %cst_3 = arith.constant 6.250000e-02 : f32
    %12 = arith.mulf %11, %cst_3 : f32
    %cst_4 = arith.constant 9.99999997E-7 : f32
    %13 = arith.addf %12, %cst_4 : f32
    %14 = math.rsqrt %13 : f32
    %15 = vector.broadcast %14 : f32 to vector<16x128xf32>
    %16 = arith.mulf %6, %15 : vector<16x128xf32>
    %c0_5 = arith.constant 0 : index
    %c0_6 = arith.constant 0 : index
    %17 = vector.load %arg1[%c0_5, %c0_6] : memref<16x128xf32, #tpu.memory_space<vmem>>, vector<16x128xf32>
    tpu.vector_store %arg1[%c0_5, %c0_6], %16 {strides = array<i32>} : memref<16x128xf32, #tpu.memory_space<vmem>>, vector<16x128xf32>,
    return
  }
}

</mosaic_0001>

<llo_original>
// kernel: tpu_custom_call.1
$region0: #{tpu_custom_call.1}
  #allocation0 [shape = 'u32[]', space=smem, size = 0x4, offset = 0x4, fixed_abs, tag = 'smem constant byte address 0x4 - core index']
  #allocation1 [shape = 'u32[144,128]{1,0:T(1,128)}', space=vmem, size = 0x12000, scoped, tag = 'internal scratch']
  %s0 = inlined_call_operand.hbm [shape: f32[16,128], index: 0, kind: input, shape index: {}]
  %s1 = inlined_call_operand.hbm [shape: f32[16,128], index: 1, kind: output, shape index: {}]
  %s2 = sld [smem:[#allocation0]]
  $region18: #{tpu_custom_call.1} parent=0
    _
  %s4 = ssub.s32 1, %s2
  %s5 = scalar_select 0, %s4, %s2
  $region1: #{tpu_custom_call.1} parent=0
    #allocation2 [shape = 'u8[8192]{0}', space=vmem, size = 0x2000, scoped, tag = 'input window, operand 0, single buffered']
    #allocation3 [shape = 's32[1]{0}', space=sflag, size = 0x4, scoped, tag = 'scoped memory for tpu_custom_call.1']
    #allocation4 [shape = 's32[1]{0}', space=sflag, size = 0x4, scoped, tag = 'scoped memory for tpu_custom_call.1']
    #allocation5 [shape = 'u8[8192]{0}', space=vmem, size = 0x2000, scoped, tag = 'output window, operand 0, single buffered']
    %6 = vsyncpa [#allocation3], 0
    %7 = vsyncpa [#allocation4], 0
    // Predicated region
    $region2: #{tpu_custom_call.1} parent=1 // pred_check
      _
    $region3: #{tpu_custom_call.1} parent=1 // pred_check_branch
      %9 = sbr.rel (0) target = $region5
    $region4: #{tpu_custom_call.1} parent=1 // pred_region
      %s11 = ssub.s32 256, 256
      %12 = vsyncadd [#allocation3], %s11
      %s13 = sshll.u32 [#allocation2], 4
      %s14 = int_to_ptr.vmem [resolvable:$true] %s13
      %19 = dma.hbm_to_vmem [thread:$0]  %s0, 256, %s14, [#allocation3], 128, 128, 8
    $region5: #{tpu_custom_call.1} parent=1 // pred_fallthru
      _
    // Predicated region
    $region6: #{tpu_custom_call.1} parent=1 // pred_check
      _
    $region7: #{tpu_custom_call.1} parent=1 // pred_check_branch
      %21 = sbr.rel (0) target = $region9
    $region8: #{tpu_custom_call.1} parent=1 // pred_region
      %22 = dma.done [#allocation3], 256
    $region9: #{tpu_custom_call.1} parent=1 // pred_fallthru
      _
    %v23 = vld [vmem:[#allocation2] sm:$0xff]
    %v24 = vld [vmem:[#allocation2 + $0x8] sm:$0xff]
    %v25 = vadd.f32 %v23, %v24
    %v26 = vrot.slane %v25, 4
    %v27 = vadd.f32 %v25, %v26
    %v28 = vrot.slane %v27, 2
    %v29 = vadd.f32 %v27, %v28
    %v30 = vrot.slane %v29, 1
    %v31 = vadd.f32 %v29, %v30
    %v32 = vrcp.pop 16.0
    %v33 = vmul.f32 %v31, %v32
    %v34 = vsub.f32 %v23, %v33
    %v35 = vsub.f32 %v24, %v33
    %v36 = vmul.f32 %v34, %v34
    %v37 = vmul.f32 %v35, %v35
    %v38 = vadd.f32 %v36, %v37
    %39 = vadd.xlane.f32.xlu0 %v38
    %v40 = vpop.xlane.xlu0 %39
    %v41 = vrot.slane %v40, 4
    %v42 = vadd.f32 %v40, %v41
    %v43 = vrot.slane %v42, 2
    %v44 = vadd.f32 %v42, %v43
    %v45 = vrot.slane %v44, 1
    %v46 = vadd.f32 %v44, %v45
    %s47 = vtos %v46
    %s48 = smul.f32 %s47, 0.0625
    %s49 = sadd.f32 %s48, 1e-06
    %v50 = vstv %s49
    %v51 = vrsqrt.pop %v50
    %s52 = vtos %v51
    %v53 = vstv %s52
    %v54 = vmul.f32 %v34, %v53
    %v55 = vmul.f32 %v35, %v53
    %56 = vst [vmem:[#allocation5] sm:$0xff] %v54
    %57 = vst [vmem:[#allocation5 + $0x8] sm:$0xff] %v55
    // Predicated region
    $region10: #{tpu_custom_call.1} parent=1 // pred_check
      _
    $region11: #{tpu_custom_call.1} parent=1 // pred_check_branch
      %59 = sbr.rel (0) target = $region13
    $region12: #{tpu_custom_call.1} parent=1 // pred_region
      %s61 = ssub.s32 256, 256
      %62 = vsyncadd [#allocation4], %s61
      %s63 = sshll.u32 [#allocation5], 4
      %s64 = int_to_ptr.vmem [resolvable:$true] %s63
      %69 = dma.vmem_to_hbm [thread:$0]  %s64, 256, %s1, [#allocation4], 128, 128, 8
    $region13: #{tpu_custom_call.1} parent=1 // pred_fallthru
      _
    // Predicated region
    $region14: #{tpu_custom_call.1} parent=1 // pred_check
      _
    $region15: #{tpu_custom_call.1} parent=1 // pred_check_branch
      %71 = sbr.rel (0) target = $region17
    $region16: #{tpu_custom_call.1} parent=1 // pred_region
      %72 = dma.done [#allocation4], 256
    $region17: #{tpu_custom_call.1} parent=1 // pred_fallthru
      _
    %73 = vsyncpa [#allocation3], 1
    %74 = vsyncpa [#allocation4], 1

</llo_original>
